<compile_context>
chip_gen: v6e
topology: v6e:2x2x1
jax: 0.10.0
libtpu: 0.0.40
codegen_flags: <defaults>
</compile_context>

<pallas_src>
import functools

import jax
import jax.numpy as jnp
from jax.experimental import pallas as pl
from jax.experimental.pallas import tpu as pltpu


_VMEM_BUDGET = 36 * 1024 * 1024  # leave headroom under v7x's 64 MiB physical VMEM


def _round_up(x, m):
    return ((x + m - 1) // m) * m


# --------------------------------------------------------------------------- kernel
def _mlp_softmax_kernel(x_ref, w1_ref, b1_ref, w2_ref, b2_ref, w3_ref, b3_ref, o_ref):
    """One batch-tile of the fused 3-layer MLP + softmax (bf16 MXU, f32 epilogue)."""
    # In-kernel cast: x is streamed as f32, converted to bf16 as VPU filler.
    x = x_ref[...].astype(jnp.bfloat16)

    # fc1 + ReLU (f32 accumulation). Hidden dim is zero-padded to a 128 multiple,
    # padded bias entries are 0 so padded activations stay exactly 0 through ReLU.
    h1 = jnp.dot(x, w1_ref[...], preferred_element_type=jnp.float32) + b1_ref[...]
    h1 = jnp.maximum(h1, 0.0)

    # fc2 + ReLU
    h2 = jnp.dot(h1.astype(jnp.bfloat16), w2_ref[...],
                 preferred_element_type=jnp.float32) + b2_ref[...]
    h2 = jnp.maximum(h2, 0.0)

    # fc3 (output lane dim padded to a 128 multiple; padded columns have bias -1e30,
    # so their softmax mass is exactly 0).
    logits = jnp.dot(h2.astype(jnp.bfloat16), w3_ref[...],
                     preferred_element_type=jnp.float32) + b3_ref[...]

    # Numerically-stable softmax over the last dim (matches F.softmax on 2-D input).
    m = jnp.max(logits, axis=-1, keepdims=True)
    e = jnp.exp(logits - m)
    denom = jnp.sum(e, axis=-1, keepdims=True)
    o_ref[...] = (e * pl.reciprocal(denom, approx=True)).astype(o_ref.dtype)


# ----------------------------------------------------------------- tiling heuristics
def _vmem_bytes_est(block_b, n_in, h_pad, n_out_pad, out_itemsize):
    """Rough VMEM footprint for one grid step (double-buffered blocks + f32 temps)."""
    x_bytes = 2 * block_b * n_in * 4                       # f32 x tile, 2 buffers
    out_bytes = 2 * block_b * n_out_pad * out_itemsize     # output tile, 2 buffers
    w_bytes = 2 * 2 * (n_in * h_pad + h_pad * h_pad + h_pad * n_out_pad)  # bf16, 2 bufs
    bias_bytes = 2 * 4 * (2 * h_pad + n_out_pad)           # f32 biases, 2 buffers
    inter = 4 * block_b * (2 * h_pad + n_out_pad)          # live f32 h1/h2/logits
    return x_bytes + out_bytes + w_bytes + bias_bytes + inter


def _pick_block_b(batch, n_in, h_pad, n_out_pad, out_itemsize):
    """Largest batch tile that fits the VMEM budget; >=2 even grid steps when B > 128
    so v7x's two TensorCores both get work on the 'parallel' batch axis."""
    candidates = (1024, 768, 512, 384, 256, 192, 128, 96, 64, 32, 16, 8)
    bmax = 8
    for c in candidates:
        if _vmem_bytes_est(c, n_in, h_pad, n_out_pad, out_itemsize) <= _VMEM_BUDGET:
            bmax = c
            break
    # TODO(synk): if the bf16 weights alone blow the budget (e.g. n_hidden >= ~4096),
    # add a hidden-dim grid axis (or single-buffer the resident weight specs) instead
    # of relying on whole-weight residency.
    if batch <= 128:
        block_b = min(_round_up(batch, 8), bmax)
    else:
        steps = max(2, pl.cdiv(batch, bmax))
        steps = steps + (steps % 2)                      # even step count for 2 TCs
        block_b = min(bmax, _round_up(pl.cdiv(batch, steps), 8))
    return max(8, block_b)


# ------------------------------------------------------------ one-time parameter prep
def prep_params(w1, b1, w2, b2, w3, b3, *, hid_align=128, out_align=128):
    """One-time prep, hoisted out of the forward hot path:
      * zero-pad the hidden dim to a multiple of `hid_align` (exact through ReLU),
      * lane-pad the output dim to a multiple of 128 with bias -1e30 (exp -> 0),
      * cast weights to bf16 for the MXU; biases stay f32.
    Weights are (in_features, out_features)."""
    n_in, n_hid = w1.shape
    n_out = w3.shape[1]
    h_pad = _round_up(n_hid, hid_align)
    o_pad = max(out_align, _round_up(n_out, out_align))

    w1p = jnp.pad(w1, ((0, 0), (0, h_pad - n_hid))).astype(jnp.bfloat16)
    b1p = jnp.pad(b1.reshape(1, -1).astype(jnp.float32), ((0, 0), (0, h_pad - n_hid)))
    w2p = jnp.pad(w2, ((0, h_pad - n_hid), (0, h_pad - n_hid))).astype(jnp.bfloat16)
    b2p = jnp.pad(b2.reshape(1, -1).astype(jnp.float32), ((0, 0), (0, h_pad - n_hid)))
    w3p = jnp.pad(w3, ((0, h_pad - n_hid), (0, o_pad - n_out))).astype(jnp.bfloat16)
    # Padded output columns get a hugely negative f32 bias so softmax gives them ~0
    # mass and the denominator over o_pad lanes equals the denominator over n_out.
    b3p = jnp.pad(b3.reshape(1, -1).astype(jnp.float32), ((0, 0), (0, o_pad - n_out)),
                  constant_values=-1e30)
    return w1p, b1p, w2p, b2p, w3p, b3p


# ----------------------------------------------------------------------- forward pass
@functools.partial(jax.jit, static_argnums=(7, 8))
def mlp_forward(x, w1p, b1p, w2p, b2p, w3p, b3p, n_out, out_dtype=jnp.float32):
    """x: (B, n_inputs) float32; prepped params from prep_params().
    Returns (B, n_out) softmax probabilities in `out_dtype` (bf16 halves output HBM
    traffic; f32 default matches the PyTorch reference)."""
    B, n_in = x.shape
    h_pad = w1p.shape[1]
    n_out_pad = w3p.shape[1]
    out_itemsize = jnp.dtype(out_dtype).itemsize

    block_b = _pick_block_b(B, n_in, h_pad, n_out_pad, out_itemsize)
    B_pad = pl.cdiv(B, block_b) * block_b
    x_p = x if B_pad == B else jnp.pad(x, ((0, B_pad - B), (0, 0)))

    est = _vmem_bytes_est(block_b, n_in, h_pad, n_out_pad, out_itemsize)
    vmem_limit = None
    if est > 30 * 1024 * 1024:  # exceeds default scoped VMEM limit -> raise it
        vmem_limit = min(_round_up(int(est * 1.25), 1 << 20), 56 * 1024 * 1024)

    grid = (B_pad // block_b,)

    out_padded = pl.pallas_call(
        _mlp_softmax_kernel,
        out_shape=jax.ShapeDtypeStruct((B_pad, n_out_pad), out_dtype),
        grid_spec=pl.GridSpec(
            grid=grid,
            in_specs=[
                pl.BlockSpec((block_b, n_in), lambda i: (i, 0)),         # x tile (f32)
                pl.BlockSpec((n_in, h_pad), lambda i: (0, 0)),           # W1 (bf16, resident)
                pl.BlockSpec((1, h_pad), lambda i: (0, 0)),              # b1 (f32)
                pl.BlockSpec((h_pad, h_pad), lambda i: (0, 0)),          # W2
                pl.BlockSpec((1, h_pad), lambda i: (0, 0)),              # b2
                pl.BlockSpec((h_pad, n_out_pad), lambda i: (0, 0)),      # W3 (lane-padded)
                pl.BlockSpec((1, n_out_pad), lambda i: (0, 0)),          # b3 (lane-padded)
            ],
            out_specs=pl.BlockSpec((block_b, n_out_pad), lambda i: (i, 0)),
        ),
        compiler_params=pltpu.CompilerParams(
            dimension_semantics=("parallel",),
            vmem_limit_bytes=vmem_limit,
        ),
    )(x_p, w1p, b1p, w2p, b2p, w3p, b3p)

    # TODO(synk): for n_out << 128, pack 128//n_out rows per 128-lane output row inside
    # the kernel to cut padded-output HBM bytes a further ~16x (unpack via reshape here).
    return out_padded[:B, :n_out]


# ------------------------------------------------------------------------- utilities
def init_params(key, n_inputs, n_outputs, n_neurons):
    """Deterministic init mirroring torch.nn.Linear default (uniform +-1/sqrt(fan_in)).
    Weights are stored as (in, out) for the x @ W convention."""
    ks = jax.random.split(key, 6)

    def linear(kw, kb, fan_in, fan_out):
        bound = 1.0 / jnp.sqrt(jnp.float32(fan_in))
        w = jax.random.uniform(kw, (fan_in, fan_out), jnp.float32, -bound, bound)
        b = jax.random.uniform(kb, (1, fan_out), jnp.float32, -bound, bound)
        return w, b

    w1, b1 = linear(ks[0], ks[1], n_inputs, n_neurons)
    w2, b2 = linear(ks[2], ks[3], n_neurons, n_neurons)
    w3, b3 = linear(ks[4], ks[5], n_neurons, n_outputs)
    return w1, b1, w2, b2, w3, b3


def reference_forward(x, w1, b1, w2, b2, w3, b3):
    h1 = jax.nn.relu(x @ w1 + b1)
    h2 = jax.nn.relu(h1 @ w2 + b2)
    return jax.nn.softmax(h2 @ w3 + b3, axis=-1)


if __name__ == "__main__":
    # Small shapes consistent with the module's forward: x is (batch, n_inputs).
    batch, n_inputs, n_outputs, n_neurons = 16, 32, 8, 64

    key = jax.random.PRNGKey(0)
    k_x, k_p = jax.random.split(key)
    x = jax.random.normal(k_x, (batch, n_inputs), jnp.float32)
    raw_params = init_params(k_p, n_inputs, n_outputs, n_neurons)

    # One-time prep (bf16 cast + hidden/output lane padding) — NOT in the hot path.
    prepped = jax.block_until_ready(prep_params(*raw_params))

    y = mlp_forward(x, *prepped, n_outputs)
    y = jax.block_until_ready(y)

    # Sanity check against a pure-JAX f32 reference (tolerance loosened for bf16 MXU
    # inputs + approx reciprocal).
    y_ref = reference_forward(x, *raw_params)
    assert y.shape == (batch, n_outputs)
    assert jnp.allclose(y, y_ref, atol=2e-2, rtol=2e-2), "mismatch vs reference"
    assert jnp.allclose(jnp.sum(y, axis=-1), 1.0, atol=1e-2), "softmax rows must sum to 1"

    print("KERNEL_OK")
</pallas_src>

<mosaic_0001>
module attributes {stable_mosaic.version = 11 : i64} {
  func.func @_mlp_softmax_kernel(%arg0: i32, %arg1: memref<16x32xf32, #tpu.memory_space<vmem>>, %arg2: memref<32x128xbf16, #tpu.memory_space<vmem>>, %arg3: memref<1x128xf32, #tpu.memory_space<vmem>>, %arg4: memref<128x128xbf16, #tpu.memory_space<vmem>>, %arg5: memref<1x128xf32, #tpu.memory_space<vmem>>, %arg6: memref<128x128xbf16, #tpu.memory_space<vmem>>, %arg7: memref<1x128xf32, #tpu.memory_space<vmem>>, %arg8: memref<16x128xf32, #tpu.memory_space<vmem>>) attributes {dimension_semantics = [#tpu.dimension_semantics<parallel>], iteration_bounds = array<i64: 1>, scalar_prefetch = 0 : i64, scratch_operands = 0 : i64, tpu.core_type = #tpu.core_type<tc>, window_params = [{transform_indices = @transform_0, window_bounds = array<i64: 16, 32>}, {pipeline_mode = #tpu.pipeline_mode<synchronous>, transform_indices = @transform_1, window_bounds = array<i64: 32, 128>}, {pipeline_mode = #tpu.pipeline_mode<synchronous>, transform_indices = @transform_2, window_bounds = array<i64: 1, 128>}, {pipeline_mode = #tpu.pipeline_mode<synchronous>, transform_indices = @transform_3, window_bounds = array<i64: 128, 128>}, {pipeline_mode = #tpu.pipeline_mode<synchronous>, transform_indices = @transform_4, window_bounds = array<i64: 1, 128>}, {pipeline_mode = #tpu.pipeline_mode<synchronous>, transform_indices = @transform_5, window_bounds = array<i64: 128, 128>}, {pipeline_mode = #tpu.pipeline_mode<synchronous>, transform_indices = @transform_6, window_bounds = array<i64: 1, 128>}, {transform_indices = @transform_7, window_bounds = array<i64: 16, 128>}]} {
    %c0 = arith.constant 0 : index
    %c0_0 = arith.constant 0 : index
    %0 = vector.load %arg1[%c0, %c0_0] : memref<16x32xf32, #tpu.memory_space<vmem>>, vector<16x32xf32>
    %1 = arith.truncf %0 : vector<16x32xf32> to vector<16x32xbf16>
    %c0_1 = arith.constant 0 : index
    %c0_2 = arith.constant 0 : index
    %2 = vector.load %arg2[%c0_1, %c0_2] : memref<32x128xbf16, #tpu.memory_space<vmem>>, vector<32x128xbf16>
    %cst = arith.constant dense<0.000000e+00> : vector<16x128xf32>
    %3 = tpu.matmul %1, %2, %cst {dimension_numbers = #tpu.dot_dimension_numbers<[1], [0], [0], [1], [0, 0, 1, 1], [], []>} : vector<16x32xbf16>, vector<32x128xbf16>, vector<16x128xf32> -> vector<16x128xf32>
    %c0_3 = arith.constant 0 : index
    %c0_4 = arith.constant 0 : index
    %4 = vector.load %arg3[%c0_3, %c0_4] : memref<1x128xf32, #tpu.memory_space<vmem>>, vector<1x128xf32>
    %5 = vector.broadcast %4 : vector<1x128xf32> to vector<16x128xf32>
    %6 = arith.addf %3, %5 : vector<16x128xf32>
    %cst_5 = arith.constant 0.000000e+00 : f32
    %7 = vector.broadcast %cst_5 : f32 to vector<16x128xf32>
    %8 = arith.maximumf %6, %7 : vector<16x128xf32>
    %9 = arith.truncf %8 : vector<16x128xf32> to vector<16x128xbf16>
    %c0_6 = arith.constant 0 : index
    %c0_7 = arith.constant 0 : index
    %10 = vector.load %arg4[%c0_6, %c0_7] : memref<128x128xbf16, #tpu.memory_space<vmem>>, vector<128x128xbf16>
    %cst_8 = arith.constant dense<0.000000e+00> : vector<16x128xf32>
    %11 = tpu.matmul %9, %10, %cst_8 {dimension_numbers = #tpu.dot_dimension_numbers<[1], [0], [0], [1], [0, 0, 1, 1], [], []>} : vector<16x128xbf16>, vector<128x128xbf16>, vector<16x128xf32> -> vector<16x128xf32>
    %c0_9 = arith.constant 0 : index
    %c0_10 = arith.constant 0 : index
    %12 = vector.load %arg5[%c0_9, %c0_10] : memref<1x128xf32, #tpu.memory_space<vmem>>, vector<1x128xf32>
    %13 = vector.broadcast %12 : vector<1x128xf32> to vector<16x128xf32>
    %14 = arith.addf %11, %13 : vector<16x128xf32>
    %cst_11 = arith.constant 0.000000e+00 : f32
    %15 = vector.broadcast %cst_11 : f32 to vector<16x128xf32>
    %16 = arith.maximumf %14, %15 : vector<16x128xf32>
    %17 = arith.truncf %16 : vector<16x128xf32> to vector<16x128xbf16>
    %c0_12 = arith.constant 0 : index
    %c0_13 = arith.constant 0 : index
    %18 = vector.load %arg6[%c0_12, %c0_13] : memref<128x128xbf16, #tpu.memory_space<vmem>>, vector<128x128xbf16>
    %cst_14 = arith.constant dense<0.000000e+00> : vector<16x128xf32>
    %19 = tpu.matmul %17, %18, %cst_14 {dimension_numbers = #tpu.dot_dimension_numbers<[1], [0], [0], [1], [0, 0, 1, 1], [], []>} : vector<16x128xbf16>, vector<128x128xbf16>, vector<16x128xf32> -> vector<16x128xf32>
    %c0_15 = arith.constant 0 : index
    %c0_16 = arith.constant 0 : index
    %20 = vector.load %arg7[%c0_15, %c0_16] : memref<1x128xf32, #tpu.memory_space<vmem>>, vector<1x128xf32>
    %21 = vector.broadcast %20 : vector<1x128xf32> to vector<16x128xf32>
    %22 = arith.addf %19, %21 : vector<16x128xf32>
    %cst_17 = arith.constant dense<0xFF800000> : vector<16xf32>
    %23 = vector.multi_reduction <maximumf>, %22, %cst_17 [1] : vector<16x128xf32> to vector<16xf32>
    %24 = vector.shape_cast %23 : vector<16xf32> to vector<16x1xf32>
    %25 = vector.broadcast %24 : vector<16x1xf32> to vector<16x128xf32>
    %26 = arith.subf %22, %25 : vector<16x128xf32>
    %27 = math.exp %26 : vector<16x128xf32>
    %cst_18 = arith.constant dense<0.000000e+00> : vector<16xf32>
    %28 = vector.multi_reduction <add>, %27, %cst_18 [1] : vector<16x128xf32> to vector<16xf32>
    %29 = vector.shape_cast %28 : vector<16xf32> to vector<16x1xf32>
    %30 = tpu.reciprocal %29 {approx = true} : vector<16x1xf32> -> vector<16x1xf32>
    %31 = vector.broadcast %30 : vector<16x1xf32> to vector<16x128xf32>
    %32 = arith.mulf %27, %31 : vector<16x128xf32>
    %c0_19 = arith.constant 0 : index
    %c0_20 = arith.constant 0 : index
    %33 = vector.load %arg8[%c0_19, %c0_20] : memref<16x128xf32, #tpu.memory_space<vmem>>, vector<16x128xf32>
    tpu.vector_store %arg8[%c0_19, %c0_20], %32 {strides = array<i32>} : memref<16x128xf32, #tpu.memory_space<vmem>>, vector<16x128xf32>,
    return
  }
  func.func @transform_0(%arg0: i32) -> (i32, i32) {
    %c0_i32 = arith.constant 0 : i32
    %c0_i32_0 = arith.constant 0 : i32
    return %arg0, %c0_i32 : i32, i32
  }
  func.func @transform_1(%arg0: i32) -> (i32, i32) {
    %c0_i32 = arith.constant 0 : i32
    %c0_i32_0 = arith.constant 0 : i32
    %c0_i32_1 = arith.constant 0 : i32
    return %c0_i32, %c0_i32_0 : i32, i32
  }
  func.func @transform_2(%arg0: i32) -> (i32, i32) {
    %c0_i32 = arith.constant 0 : i32
    %c0_i32_0 = arith.constant 0 : i32
    %c0_i32_1 = arith.constant 0 : i32
    return %c0_i32, %c0_i32_0 : i32, i32
  }
  func.func @transform_3(%arg0: i32) -> (i32, i32) {
    %c0_i32 = arith.constant 0 : i32
    %c0_i32_0 = arith.constant 0 : i32
    %c0_i32_1 = arith.constant 0 : i32
    return %c0_i32, %c0_i32_0 : i32, i32
  }
  func.func @transform_4(%arg0: i32) -> (i32, i32) {
    %c0_i32 = arith.constant 0 : i32
    %c0_i32_0 = arith.constant 0 : i32
    %c0_i32_1 = arith.constant 0 : i32
    return %c0_i32, %c0_i32_0 : i32, i32
  }
  func.func @transform_5(%arg0: i32) -> (i32, i32) {
    %c0_i32 = arith.constant 0 : i32
    %c0_i32_0 = arith.constant 0 : i32
    %c0_i32_1 = arith.constant 0 : i32
    return %c0_i32, %c0_i32_0 : i32, i32
  }
  func.func @transform_6(%arg0: i32) -> (i32, i32) {
    %c0_i32 = arith.constant 0 : i32
    %c0_i32_0 = arith.constant 0 : i32
    %c0_i32_1 = arith.constant 0 : i32
    return %c0_i32, %c0_i32_0 : i32, i32
  }
  func.func @transform_7(%arg0: i32) -> (i32, i32) {
    %c0_i32 = arith.constant 0 : i32
    %c0_i32_0 = arith.constant 0 : i32
    return %arg0, %c0_i32 : i32, i32
  }
}

</mosaic_0001>

<llo_original>
// kernel: mlp_forward.1
$region0: #{mlp_forward.1}
  #allocation0 [shape = 'u32[]', space=smem, size = 0x4, offset = 0x4, fixed_abs, tag = 'smem constant byte address 0x4 - core index']
  #allocation1 [shape = 'u32[144,128]{1,0:T(1,128)}', space=vmem, size = 0x12000, scoped, tag = 'internal scratch']
  %s0 = inlined_call_operand.hbm [shape: f32[16,32], index: 0, kind: input, shape index: {}]
  %s1 = inlined_call_operand.hbm [shape: bf16[32,128], index: 1, kind: input, shape index: {}]
  %s2 = inlined_call_operand.vmem [shape: f32[1,128], index: 2, kind: input, shape index: {}]
  %s3 = inlined_call_operand.hbm [shape: bf16[128,128], index: 3, kind: input, shape index: {}]
  %s4 = inlined_call_operand.vmem [shape: f32[1,128], index: 4, kind: input, shape index: {}]
  %s5 = inlined_call_operand.hbm [shape: bf16[128,128], index: 5, kind: input, shape index: {}]
  %s6 = inlined_call_operand.vmem [shape: f32[1,128], index: 6, kind: input, shape index: {}]
  %s7 = inlined_call_operand.vmem [shape: f32[16,128], index: 7, kind: output, shape index: {}]
  %s8 = sld [smem:[#allocation0]]
  $region54: #{mlp_forward.1} parent=0
    _
  %s10 = ssub.s32 1, %s8
  %s11 = scalar_select 0, %s10, %s8
  $region1: #{mlp_forward.1} parent=0
    #allocation2 [shape = 'u8[8192]{0}', space=vmem, size = 0x2000, scoped, tag = 'input window, operand 0, single buffered']
    #allocation3 [shape = 's32[1]{0}', space=sflag, size = 0x4, scoped, tag = 'scoped memory for mlp_forward.1']
    #allocation4 [shape = 'u8[8192]{0}', space=vmem, size = 0x2000, scoped, tag = 'input window, operand 1, single buffered']
    #allocation5 [shape = 's32[1]{0}', space=sflag, size = 0x4, scoped, tag = 'scoped memory for mlp_forward.1']
    #allocation6 [shape = 'u8[32768]{0}', space=vmem, size = 0x8000, scoped, tag = 'input window, operand 3, single buffered']
    #allocation7 [shape = 'u8[32768]{0}', space=vmem, size = 0x8000, scoped, tag = 'input window, operand 5, single buffered']
    #allocation8 [shape = 's32[1]{0}', space=sflag, size = 0x4, scoped, tag = 'scoped memory for mlp_forward.1']
    %12 = vsyncpa [#allocation3], 0
    %13 = vsyncpa [#allocation5], 0
    %14 = vsyncpa [#allocation8], 0
    // Predicated region
    $region2: #{mlp_forward.1} parent=1 // pred_check
      _
    $region3: #{mlp_forward.1} parent=1 // pred_check_branch
      %16 = sbr.rel (0) target = $region5
    $region4: #{mlp_forward.1} parent=1 // pred_region
      %s18 = ssub.s32 256, 256
      %19 = vsyncadd [#allocation3], %s18
      %s20 = sshll.u32 [#allocation2], 4
      %s21 = int_to_ptr.vmem [resolvable:$true] %s20
      %26 = dma.hbm_to_vmem [thread:$0]  %s0, 256, %s21, [#allocation3], 128, 128, 8
    $region5: #{mlp_forward.1} parent=1 // pred_fallthru
      _
    // Predicated region
    $region6: #{mlp_forward.1} parent=1 // pred_check
      _
    $region7: #{mlp_forward.1} parent=1 // pred_check_branch
      %28 = sbr.rel (0) target = $region9
    $region8: #{mlp_forward.1} parent=1 // pred_region
      %s30 = ssub.s32 256, 256
      %31 = vsyncadd [#allocation5], %s30
      %s32 = sshll.u32 [#allocation4], 4
      %s33 = int_to_ptr.vmem [resolvable:$true] %s32
      %38 = dma.hbm_to_vmem [thread:$0]  %s1, 256, %s33, [#allocation5], 64, 64, 4
    $region9: #{mlp_forward.1} parent=1 // pred_fallthru
      _
    // Predicated region
    $region10: #{mlp_forward.1} parent=1 // pred_check
      _
    $region11: #{mlp_forward.1} parent=1 // pred_check_branch
      %40 = sbr.rel (0) target = $region13
    $region12: #{mlp_forward.1} parent=1 // pred_region
      _
    $region13: #{mlp_forward.1} parent=1 // pred_fallthru
      _
    // Predicated region
    $region14: #{mlp_forward.1} parent=1 // pred_check
      _
    $region15: #{mlp_forward.1} parent=1 // pred_check_branch
      %42 = sbr.rel (0) target = $region17
    $region16: #{mlp_forward.1} parent=1 // pred_region
      %s44 = ssub.s32 1024, 1024
      %45 = vsyncadd [#allocation5], %s44
      %s46 = sshll.u32 [#allocation6], 4
      %s47 = int_to_ptr.vmem [resolvable:$true] %s46
      %52 = dma.hbm_to_vmem [thread:$0]  %s3, 1024, %s47, [#allocation5], 64, 64, 4
    $region17: #{mlp_forward.1} parent=1 // pred_fallthru
      _
    // Predicated region
    $region18: #{mlp_forward.1} parent=1 // pred_check
      _
    $region19: #{mlp_forward.1} parent=1 // pred_check_branch
      %54 = sbr.rel (0) target = $region21
    $region20: #{mlp_forward.1} parent=1 // pred_region
      _
    $region21: #{mlp_forward.1} parent=1 // pred_fallthru
      _
    // Predicated region
    $region22: #{mlp_forward.1} parent=1 // pred_check
      _
    $region23: #{mlp_forward.1} parent=1 // pred_check_branch
      %56 = sbr.rel (0) target = $region25
    $region24: #{mlp_forward.1} parent=1 // pred_region
      %s58 = ssub.s32 1024, 1024
      %59 = vsyncadd [#allocation8], %s58
      %s60 = sshll.u32 [#allocation7], 4
      %s61 = int_to_ptr.vmem [resolvable:$true] %s60
      %66 = dma.hbm_to_vmem [thread:$0]  %s5, 1024, %s61, [#allocation8], 64, 64, 4
    $region25: #{mlp_forward.1} parent=1 // pred_fallthru
      _
    // Predicated region
    $region26: #{mlp_forward.1} parent=1 // pred_check
      _
    $region27: #{mlp_forward.1} parent=1 // pred_check_branch
      %68 = sbr.rel (0) target = $region29
    $region28: #{mlp_forward.1} parent=1 // pred_region
      _
    $region29: #{mlp_forward.1} parent=1 // pred_fallthru
      _
    // Predicated region
    $region30: #{mlp_forward.1} parent=1 // pred_check
      _
    $region31: #{mlp_forward.1} parent=1 // pred_check_branch
      %70 = sbr.rel (0) target = $region33
    $region32: #{mlp_forward.1} parent=1 // pred_region
      %71 = dma.done [#allocation3], 256
    $region33: #{mlp_forward.1} parent=1 // pred_fallthru
      _
    // Predicated region
    $region34: #{mlp_forward.1} parent=1 // pred_check
      _
    $region35: #{mlp_forward.1} parent=1 // pred_check_branch
      %73 = sbr.rel (0) target = $region37
    $region36: #{mlp_forward.1} parent=1 // pred_region
      %74 = dma.done [#allocation5], 256
    $region37: #{mlp_forward.1} parent=1 // pred_fallthru
      _
    // Predicated region
    $region38: #{mlp_forward.1} parent=1 // pred_check
      _
    $region39: #{mlp_forward.1} parent=1 // pred_check_branch
      %76 = sbr.rel (0) target = $region41
    $region40: #{mlp_forward.1} parent=1 // pred_region
      %77 = dma.done [#allocation5], 1024
    $region41: #{mlp_forward.1} parent=1 // pred_fallthru
      _
    // Predicated region
    $region42: #{mlp_forward.1} parent=1 // pred_check
      _
    $region43: #{mlp_forward.1} parent=1 // pred_check_branch
      %79 = sbr.rel (0) target = $region45
    $region44: #{mlp_forward.1} parent=1 // pred_region
      %80 = dma.done [#allocation8], 1024
    $region45: #{mlp_forward.1} parent=1 // pred_fallthru
      _
    %v82 = vld [vmem:[#allocation2] sm:$0xff]
    %v83 = vld [vmem:[#allocation2 + $0x8] sm:$0xff]
    %v84 = vpack.c.bf16 %v83, %v82
    %v85 = vld [vmem:[#allocation4] sm:$0xf]
    %v86 = vld [vmem:[#allocation4 + $0x4] sm:$0xf]
    %v87 = vld [vmem:[#allocation4 + $0x8] sm:$0xf]
    %v88 = vld [vmem:[#allocation4 + $0xc] sm:$0xf]
    %v89 = vld [vmem:[%s2] sm:$0x1]
    %v91 = vlaneseq
    %v92 = vshrl.u32 %v91, 7
    %v93 = vsub.s32 0, %v92
    %v94 = vrot.slane %v89, %v93
    %v100 = vunpack.c.l.b16 %v85
    %v101 = vunpack.c.l.b16 %v86
    %v102 = vunpack.c.l.b16 %v87
    %v103 = vunpack.c.l.b16 %v88
    %v104 = vpack.c.b16 %v101, %v100
    %v105 = vpack.c.b16 %v103, %v102
    %vm108 = vcmask 261120
    %v110 = vsel %vm108, %v84, 0
    %112 = vmatprep.subr.bf16.mxu0 0
    %113 = vmatpush1.bf16.msra.mxu0 0
    %114 = vmatprep.subr.bf16.mxu0 0
    %115 = vmatpush1.bf16.msra.mxu0 0
    %116 = vmatprep.subr.bf16.mxu0 0
    %117 = vmatpush1.bf16.msra.mxu0 0
    %118 = vmatprep.subr.bf16.mxu0 0
    %119 = vmatpush1.bf16.msra.mxu0 0
    %120 = vmatprep.subr.bf16.mxu0 0
    %121 = vmatpush1.bf16.msra.mxu0 0
    %122 = vmatprep.subr.bf16.mxu0 0
    %123 = vmatpush1.bf16.msra.mxu0 0
    %124 = vmatprep.subr.bf16.mxu0 0
    %125 = vmatpush1.bf16.msra.mxu0 %v105
    %126 = vmatprep.subr.bf16.mxu0 0
    %127 = vmatpush1.bf16.msra.mxu0 %v104
    %128 = vmatprep.subr.bf16.mxu0 0
    %129 = vmatpush2.bf16.msra.mxu0 0
    %130 = vmatprep.subr.bf16.mxu0 0
    %131 = vmatpush2.bf16.msra.mxu0 0
    %132 = vmatprep.subr.bf16.mxu0 0
    %133 = vmatpush2.bf16.msra.mxu0 0
    %134 = vmatprep.subr.bf16.mxu0 0
    %135 = vmatpush2.bf16.msra.mxu0 0
    %136 = vmatprep.subr.bf16.mxu0 0
    %137 = vmatpush2.bf16.msra.mxu0 0
    %138 = vmatprep.subr.bf16.mxu0 0
    %139 = vmatpush2.bf16.msra.mxu0 0
    %140 = vmatprep.subr.bf16.mxu0 0
    %141 = vmatpush2.bf16.msra.mxu0 0
    %142 = vmatprep.subr.bf16.mxu0 0
    %143 = vmatpush2.bf16.msra.mxu0 0
    %144 = vmatprep.mubr.bf16.mxu0 0
    %145 = vmatmul.mubr.bf16.gmra.mxu0 %v110
    %v146 = vpop.f32.mrf.mxu0
    %v147 = vadd.f32 %v94, %v146
    %v148 = vpop.f32.mrf.mxu0
    %v149 = vpop.f32.mrf.mxu0
    %v150 = vadd.f32 %v94, %v149
    %v151 = vpop.f32.mrf.mxu0
    %152 = vdwg.mxu0
    %v153 = vmax.f32 %v147, 0.0
    %v154 = vmax.f32 %v150, 0.0
    %v155 = vpack.c.bf16 %v154, %v153
    %v156 = vld [vmem:[#allocation6] sm:$0xf]
    %v157 = vld [vmem:[#allocation6 + $0x4] sm:$0xf]
    %v158 = vld [vmem:[#allocation6 + $0x8] sm:$0xf]
    %v159 = vld [vmem:[#allocation6 + $0xc] sm:$0xf]
    %v160 = vld [vmem:[#allocation6 + $0x10] sm:$0xf]
    %v161 = vld [vmem:[#allocation6 + $0x14] sm:$0xf]
    %v162 = vld [vmem:[#allocation6 + $0x18] sm:$0xf]
    %v163 = vld [vmem:[#allocation6 + $0x1c] sm:$0xf]
    %v164 = vld [vmem:[#allocation6 + $0x20] sm:$0xf]
    %v165 = vld [vmem:[#allocation6 + $0x24] sm:$0xf]
    %v166 = vld [vmem:[#allocation6 + $0x28] sm:$0xf]
    %v167 = vld [vmem:[#allocation6 + $0x2c] sm:$0xf]
    %v168 = vld [vmem:[#allocation6 + $0x30] sm:$0xf]
    %v169 = vld [vmem:[#allocation6 + $0x34] sm:$0xf]
    %v170 = vld [vmem:[#allocation6 + $0x38] sm:$0xf]
    %v171 = vld [vmem:[#allocation6 + $0x3c] sm:$0xf]
    %v172 = vld [vmem:[%s4] sm:$0x1]
    %v174 = vlaneseq
    %v175 = vshrl.u32 %v174, 7
    %v176 = vsub.s32 0, %v175
    %v177 = vrot.slane %v172, %v176
    %v195 = vunpack.c.l.b16 %v156
    %v196 = vunpack.c.l.b16 %v157
    %v197 = vunpack.c.l.b16 %v158
    %v198 = vunpack.c.l.b16 %v159
    %v199 = vunpack.c.l.b16 %v160
    %v200 = vunpack.c.l.b16 %v161
    %v201 = vunpack.c.l.b16 %v162
    %v202 = vunpack.c.l.b16 %v163
    %v203 = vunpack.c.l.b16 %v164
    %v204 = vunpack.c.l.b16 %v165
    %v205 = vunpack.c.l.b16 %v166
    %v206 = vunpack.c.l.b16 %v167
    %v207 = vunpack.c.l.b16 %v168
    %v208 = vunpack.c.l.b16 %v169
    %v209 = vunpack.c.l.b16 %v170
    %v210 = vunpack.c.l.b16 %v171
    %v211 = vpack.c.b16 %v196, %v195
    %v212 = vpack.c.b16 %v198, %v197
    %v213 = vpack.c.b16 %v200, %v199
    %v214 = vpack.c.b16 %v202, %v201
    %v215 = vpack.c.b16 %v204, %v203
    %v216 = vpack.c.b16 %v206, %v205
    %v217 = vpack.c.b16 %v208, %v207
    %v218 = vpack.c.b16 %v210, %v209
    %227 = vmatprep.subr.bf16.mxu0 0
    %228 = vmatpush1.bf16.msra.mxu0 %v218
    %229 = vmatprep.subr.bf16.mxu0 0
    %230 = vmatpush1.bf16.msra.mxu0 %v217
    %231 = vmatprep.subr.bf16.mxu0 0
    %232 = vmatpush1.bf16.msra.mxu0 %v216
    %233 = vmatprep.subr.bf16.mxu0 0
    %234 = vmatpush1.bf16.msra.mxu0 %v215
    %235 = vmatprep.subr.bf16.mxu0 0
    %236 = vmatpush1.bf16.msra.mxu0 %v214
    %237 = vmatprep.subr.bf16.mxu0 0
    %238 = vmatpush1.bf16.msra.mxu0 %v213
    %239 = vmatprep.subr.bf16.mxu0 0
    %240 = vmatpush1.bf16.msra.mxu0 %v212
    %241 = vmatprep.subr.bf16.mxu0 0
    %242 = vmatpush1.bf16.msra.mxu0 %v211
    %243 = vmatprep.subr.bf16.mxu0 0
    %244 = vmatpush2.bf16.msra.mxu0 0
    %245 = vmatprep.subr.bf16.mxu0 0
    %246 = vmatpush2.bf16.msra.mxu0 0
    %247 = vmatprep.subr.bf16.mxu0 0
    %248 = vmatpush2.bf16.msra.mxu0 0
    %249 = vmatprep.subr.bf16.mxu0 0
    %250 = vmatpush2.bf16.msra.mxu0 0
    %251 = vmatprep.subr.bf16.mxu0 0
    %252 = vmatpush2.bf16.msra.mxu0 0
    %253 = vmatprep.subr.bf16.mxu0 0
    %254 = vmatpush2.bf16.msra.mxu0 0
    %255 = vmatprep.subr.bf16.mxu0 0
    %256 = vmatpush2.bf16.msra.mxu0 0
    %257 = vmatprep.subr.bf16.mxu0 0
    %258 = vmatpush2.bf16.msra.mxu0 0
    %259 = vmatprep.mubr.bf16.mxu0 0
    %260 = vmatmul.mubr.bf16.gmra.mxu0 %v155
    %v261 = vpop.f32.mrf.mxu0
    %v262 = vadd.f32 %v177, %v261
    %v263 = vpop.f32.mrf.mxu0
    %v264 = vpop.f32.mrf.mxu0
    %v265 = vadd.f32 %v177, %v264
    %v266 = vpop.f32.mrf.mxu0
    %267 = vdwg.mxu0
    %v268 = vmax.f32 %v262, 0.0
    %v269 = vmax.f32 %v265, 0.0
    %v270 = vpack.c.bf16 %v269, %v268
    %v271 = vld [vmem:[#allocation7] sm:$0xf]
    %v272 = vld [vmem:[#allocation7 + $0x4] sm:$0xf]
    %v273 = vld [vmem:[#allocation7 + $0x8] sm:$0xf]
    %v274 = vld [vmem:[#allocation7 + $0xc] sm:$0xf]
    %v275 = vld [vmem:[#allocation7 + $0x10] sm:$0xf]
    %v276 = vld [vmem:[#allocation7 + $0x14] sm:$0xf]
    %v277 = vld [vmem:[#allocation7 + $0x18] sm:$0xf]
    %v278 = vld [vmem:[#allocation7 + $0x1c] sm:$0xf]
    %v279 = vld [vmem:[#allocation7 + $0x20] sm:$0xf]
    %v280 = vld [vmem:[#allocation7 + $0x24] sm:$0xf]
    %v281 = vld [vmem:[#allocation7 + $0x28] sm:$0xf]
    %v282 = vld [vmem:[#allocation7 + $0x2c] sm:$0xf]
    %v283 = vld [vmem:[#allocation7 + $0x30] sm:$0xf]
    %v284 = vld [vmem:[#allocation7 + $0x34] sm:$0xf]
    %v285 = vld [vmem:[#allocation7 + $0x38] sm:$0xf]
    %v286 = vld [vmem:[#allocation7 + $0x3c] sm:$0xf]
    %v287 = vld [vmem:[%s6] sm:$0x1]
    %v289 = vlaneseq
    %v290 = vshrl.u32 %v289, 7
    %v291 = vsub.s32 0, %v290
    %v292 = vrot.slane %v287, %v291
    %v310 = vunpack.c.l.b16 %v271
    %v311 = vunpack.c.l.b16 %v272
    %v312 = vunpack.c.l.b16 %v273
    %v313 = vunpack.c.l.b16 %v274
    %v314 = vunpack.c.l.b16 %v275
    %v315 = vunpack.c.l.b16 %v276
    %v316 = vunpack.c.l.b16 %v277
    %v317 = vunpack.c.l.b16 %v278
    %v318 = vunpack.c.l.b16 %v279
    %v319 = vunpack.c.l.b16 %v280
    %v320 = vunpack.c.l.b16 %v281
    %v321 = vunpack.c.l.b16 %v282
    %v322 = vunpack.c.l.b16 %v283
    %v323 = vunpack.c.l.b16 %v284
    %v324 = vunpack.c.l.b16 %v285
    %v325 = vunpack.c.l.b16 %v286
    %v326 = vpack.c.b16 %v311, %v310
    %v327 = vpack.c.b16 %v313, %v312
    %v328 = vpack.c.b16 %v315, %v314
    %v329 = vpack.c.b16 %v317, %v316
    %v330 = vpack.c.b16 %v319, %v318
    %v331 = vpack.c.b16 %v321, %v320
    %v332 = vpack.c.b16 %v323, %v322
    %v333 = vpack.c.b16 %v325, %v324
    %342 = vmatprep.subr.bf16.mxu0 0
    %343 = vmatpush1.bf16.msra.mxu0 %v333
    %344 = vmatprep.subr.bf16.mxu0 0
    %345 = vmatpush1.bf16.msra.mxu0 %v332
    %346 = vmatprep.subr.bf16.mxu0 0
    %347 = vmatpush1.bf16.msra.mxu0 %v331
    %348 = vmatprep.subr.bf16.mxu0 0
    %349 = vmatpush1.bf16.msra.mxu0 %v330
    %350 = vmatprep.subr.bf16.mxu0 0
    %351 = vmatpush1.bf16.msra.mxu0 %v329
    %352 = vmatprep.subr.bf16.mxu0 0
    %353 = vmatpush1.bf16.msra.mxu0 %v328
    %354 = vmatprep.subr.bf16.mxu0 0
    %355 = vmatpush1.bf16.msra.mxu0 %v327
    %356 = vmatprep.subr.bf16.mxu0 0
    %357 = vmatpush1.bf16.msra.mxu0 %v326
    %358 = vmatprep.subr.bf16.mxu0 0
    %359 = vmatpush2.bf16.msra.mxu0 0
    %360 = vmatprep.subr.bf16.mxu0 0
    %361 = vmatpush2.bf16.msra.mxu0 0
    %362 = vmatprep.subr.bf16.mxu0 0
    %363 = vmatpush2.bf16.msra.mxu0 0
    %364 = vmatprep.subr.bf16.mxu0 0
    %365 = vmatpush2.bf16.msra.mxu0 0
    %366 = vmatprep.subr.bf16.mxu0 0
    %367 = vmatpush2.bf16.msra.mxu0 0
    %368 = vmatprep.subr.bf16.mxu0 0
    %369 = vmatpush2.bf16.msra.mxu0 0
    %370 = vmatprep.subr.bf16.mxu0 0
    %371 = vmatpush2.bf16.msra.mxu0 0
    %372 = vmatprep.subr.bf16.mxu0 0
    %373 = vmatpush2.bf16.msra.mxu0 0
    %374 = vmatprep.mubr.bf16.mxu0 0
    %375 = vmatmul.mubr.bf16.gmra.mxu0 %v270
    %v376 = vpop.f32.mrf.mxu0
    %v377 = vadd.f32 %v292, %v376
    %v378 = vpop.f32.mrf.mxu0
    %v379 = vpop.f32.mrf.mxu0
    %v380 = vadd.f32 %v292, %v379
    %v381 = vpop.f32.mrf.mxu0
    %382 = vdwg.mxu0
    %383 = vmax.xlane.f32.xlu0 %v377
    %v384 = vpop.xlane.xlu0 %383
    %385 = vmax.xlane.f32.xlu0 %v380
    %v386 = vpop.xlane.xlu0 %385
    %v387 = vsub.f32 %v377, %v384
    %v388 = vsub.f32 %v380, %v386
    %v389 = vmul.f32 %v387, 1.442695
    %v390 = vpow.pop %v389
    %v391 = vmul.f32 %v388, 1.442695
    %v392 = vpow.pop %v391
    %393 = vadd.xlane.f32.xlu0 %v390
    %v394 = vpop.xlane.xlu0 %393
    %395 = vadd.xlane.f32.xlu0 %v392
    %v396 = vpop.xlane.xlu0 %395
    %v397 = vrcp.pop %v394
    %v398 = vrcp.pop %v396
    %v399 = vmul.f32 %v390, %v397
    %v400 = vmul.f32 %v392, %v398
    %401 = vst [vmem:[%s7] sm:$0xff] %v399
    %402 = vst [vmem:[%s7 + $0x8] sm:$0xff] %v400
    // Predicated region
    $region46: #{mlp_forward.1} parent=1 // pred_check
      _
    $region47: #{mlp_forward.1} parent=1 // pred_check_branch
      %404 = sbr.rel (0) target = $region49
    $region48: #{mlp_forward.1} parent=1 // pred_region
      _
    $region49: #{mlp_forward.1} parent=1 // pred_fallthru
      _
    // Predicated region
    $region50: #{mlp_forward.1} parent=1 // pred_check
      _
    $region51: #{mlp_forward.1} parent=1 // pred_check_branch
      %406 = sbr.rel (0) target = $region53
    $region52: #{mlp_forward.1} parent=1 // pred_region
      _
    $region53: #{mlp_forward.1} parent=1 // pred_fallthru
      _
    %407 = vsyncpa [#allocation3], 1
    %408 = vsyncpa [#allocation5], 1
    %409 = vsyncpa [#allocation8], 1

</llo_original>
